<compile_context>
chip_gen: v7x
topology: tpu7x:2x2x1
jax: 0.10.0
libtpu: 0.0.40
codegen_flags: <defaults>
</compile_context>

<pallas_src>
import jax
import jax.numpy as jnp
import numpy as np
from jax.experimental import pallas as pl
from jax.experimental.pallas import tpu as pltpu

_LANE = 128
_SUBLANE = 8
# ~2 MiB per tile: input + output, each double-buffered => ~4x tile bytes of
# VMEM, comfortably under v5e's 16 MiB scoped default and v7x's 32 MiB.
_TARGET_TILE_BYTES = 2 * 1024 * 1024


def print_size_forward(x):
    """Mirrors PrintSize.forward: prints the (static) shape of x.

    No device work is performed.  Under jit this fires once per trace, not
    per call (same as any host-side print of static metadata).
    """
    # Equivalent of `print(x.shape)` in the PyTorch module.
    print(tuple(x.shape))
    # TODO(synk): PrintSize.forward returns None; we return x unchanged so the
    # caller has something device-side to hold on to, at zero cost.
    return x


# ----------------------------------------------------------------------------
# Debug-only identity pass-through kernel (kept so a Pallas kernel is actually
# compiled and run in this script; not part of the hot path).
# ----------------------------------------------------------------------------
def _identity_kernel(x_ref, o_ref):
    o_ref[...] = x_ref[...]


def _choose_lane_dense_layout(total_elems, itemsize):
    """Pick (rows, cols, row_tile) with cols % 128 == 0, rows % 8 == 0,
    rows % row_tile == 0, row_tile % 8 == 0 and row_tile*cols*itemsize within
    the tile budget.  Returns None if no such factorization exists."""
    max_cols = min(total_elems, _TARGET_TILE_BYTES // (itemsize * _SUBLANE))
    best_cols = None
    cols = _LANE
    while cols <= max_cols:
        if total_elems % cols == 0 and (total_elems // cols) % _SUBLANE == 0:
            best_cols = cols  # keep the largest lane-dense cols that works
        cols += _LANE
    if best_cols is None:
        return None
    rows = total_elems // best_cols
    max_row_tile = max(
        _SUBLANE,
        (_TARGET_TILE_BYTES // (best_cols * itemsize)) // _SUBLANE * _SUBLANE,
    )
    d = rows // _SUBLANE
    row_tile = _SUBLANE
    for cand in range(min(d, max_row_tile // _SUBLANE), 0, -1):
        if d % cand == 0:
            row_tile = cand * _SUBLANE
            break
    return rows, best_cols, row_tile


def identity_copy_debug(x):
    """Tiled, pipelined Pallas identity copy of x (debug / verification only)."""
    total = x.size
    itemsize = x.dtype.itemsize
    cost = pl.CostEstimate(
        flops=0, transcendentals=0, bytes_accessed=2 * total * itemsize
    )
    layout = _choose_lane_dense_layout(total, itemsize)

    if layout is None:
        # No lane-dense factorization: fall back to one whole-array block
        # (legal because the block equals the full array dims).
        x2d = x.reshape(1, total)
        out = pl.pallas_call(
            _identity_kernel,
            out_shape=jax.ShapeDtypeStruct(x2d.shape, x2d.dtype),
            grid=(1,),
            in_specs=[pl.BlockSpec((1, total), lambda i: (0, 0))],
            out_specs=pl.BlockSpec((1, total), lambda i: (0, 0)),
            input_output_aliases={0: 0},
            cost_estimate=cost,
            compiler_params=pltpu.CompilerParams(
                dimension_semantics=("arbitrary",)
            ),
        )(x2d)
        return out.reshape(x.shape)

    rows, cols, row_tile = layout
    x2d = x.reshape(rows, cols)
    out = pl.pallas_call(
        _identity_kernel,
        out_shape=jax.ShapeDtypeStruct((rows, cols), x2d.dtype),
        grid=(rows // row_tile,),
        in_specs=[pl.BlockSpec((row_tile, cols), lambda i: (i, 0))],
        out_specs=pl.BlockSpec((row_tile, cols), lambda i: (i, 0)),
        input_output_aliases={0: 0},
        cost_estimate=cost,
        compiler_params=pltpu.CompilerParams(
            dimension_semantics=("parallel",)
        ),
    )(x2d)
    return out.reshape(x.shape)


if __name__ == "__main__":
    key = jax.random.PRNGKey(0)
    # Small NCHW input consistent with a conv-style module.
    x = jax.random.normal(key, (2, 4, 16, 16), dtype=jnp.float32)
    x_host = np.asarray(x)  # host copy captured before any kernel runs

    # Forward-pass semantics of PrintSize: host-side print, no device kernel.
    y = print_size_forward(x)
    y = jax.block_until_ready(y)
    assert y.shape == x.shape

    # Exercise the Pallas kernel once (debug path) and verify exactness.
    y_dbg = identity_copy_debug(x)
    y_dbg = jax.block_until_ready(y_dbg)
    assert y_dbg.shape == x.shape
    assert np.array_equal(np.asarray(y_dbg), x_host)

    print("KERNEL_OK")
</pallas_src>

<mosaic_0001>
module attributes {stable_mosaic.version = 11 : i64} {
  func.func @_identity_kernel(%arg0: i32, %arg1: memref<8x256xf32, #tpu.memory_space<vmem>>, %arg2: memref<8x256xf32, #tpu.memory_space<vmem>>) attributes {dimension_semantics = [#tpu.dimension_semantics<parallel>], iteration_bounds = array<i64: 1>, scalar_prefetch = 0 : i64, scratch_operands = 0 : i64, tpu.core_type = #tpu.core_type<tc>, window_params = [{transform_indices = @transform_0, window_bounds = array<i64: 8, 256>}, {transform_indices = @transform_1, window_bounds = array<i64: 8, 256>}]} {
    %c0 = arith.constant 0 : index
    %c0_0 = arith.constant 0 : index
    %0 = vector.load %arg1[%c0, %c0_0] : memref<8x256xf32, #tpu.memory_space<vmem>>, vector<8x256xf32>
    %c0_1 = arith.constant 0 : index
    %c0_2 = arith.constant 0 : index
    %1 = vector.load %arg2[%c0_1, %c0_2] : memref<8x256xf32, #tpu.memory_space<vmem>>, vector<8x256xf32>
    tpu.vector_store %arg2[%c0_1, %c0_2], %0 {strides = array<i32>} : memref<8x256xf32, #tpu.memory_space<vmem>>, vector<8x256xf32>,
    return
  }
  func.func @transform_0(%arg0: i32) -> (i32, i32) {
    %c0_i32 = arith.constant 0 : i32
    %c0_i32_0 = arith.constant 0 : i32
    return %arg0, %c0_i32 : i32, i32
  }
  func.func @transform_1(%arg0: i32) -> (i32, i32) {
    %c0_i32 = arith.constant 0 : i32
    %c0_i32_0 = arith.constant 0 : i32
    return %arg0, %c0_i32 : i32, i32
  }
}

</mosaic_0001>

<llo_original>
// kernel: tpu_custom_call.1
$region0: #{tpu_custom_call.1}
  #allocation0 [shape = 'u32[]', space=smem, size = 0x4, offset = 0x4, fixed_abs, tag = 'smem constant byte address 0x4 - core index']
  #allocation1 [shape = 'u32[144,128]{1,0:T(1,128)}', space=vmem, size = 0x12000, scoped, tag = 'internal scratch']
  %s0 = inlined_call_operand.hbm [shape: f32[8,256], index: 0, kind: input, shape index: {}, may-alias: {0,1}]
  %s1 = inlined_call_operand.hbm [shape: f32[8,256], index: 1, kind: output, shape index: {}, may-alias: {0,1}]
  %s2 = sld [smem:[#allocation0]]
  $region18: #{tpu_custom_call.1} parent=0
    _
  %s4 = ssub.s32 1, %s2
  %s5 = scalar_select 0, %s4, %s2
  $region1: #{tpu_custom_call.1} parent=0
    #allocation2 [shape = 'u8[8192]{0}', space=vmem, size = 0x2000, scoped, tag = 'input window, operand 0, single buffered']
    #allocation3 [shape = 's32[1]{0}', space=sflag, size = 0x4, scoped, tag = 'scoped memory for tpu_custom_call.1']
    #allocation4 [shape = 's32[1]{0}', space=sflag, size = 0x4, scoped, tag = 'scoped memory for tpu_custom_call.1']
    #allocation5 [shape = 'u8[8192]{0}', space=vmem, size = 0x2000, scoped, tag = 'output window, operand 0, single buffered']
    %6 = vsyncpa [#allocation3], 0
    %7 = vsyncpa [#allocation4], 0
    // Predicated region
    $region2: #{tpu_custom_call.1} parent=1 // pred_check
      _
    $region3: #{tpu_custom_call.1} parent=1 // pred_check_branch
      %9 = sbr.rel (0) target = $region5
    $region4: #{tpu_custom_call.1} parent=1 // pred_region
      %s11 = ssub.s32 256, 256
      %12 = vsyncadd [#allocation3], %s11
      %s14 = sshll.u32 [#allocation2], 4
      %s15 = int_to_ptr.vmem [resolvable:$true] %s14
      %17 = dma.hbm_to_vmem [thread:$0]  %s0, 256, %s15, [#allocation3]
    $region5: #{tpu_custom_call.1} parent=1 // pred_fallthru
      _
    // Predicated region
    $region6: #{tpu_custom_call.1} parent=1 // pred_check
      _
    $region7: #{tpu_custom_call.1} parent=1 // pred_check_branch
      %19 = sbr.rel (0) target = $region9
    $region8: #{tpu_custom_call.1} parent=1 // pred_region
      %20 = dma.done [#allocation3], 256
    $region9: #{tpu_custom_call.1} parent=1 // pred_fallthru
      _
    %v21 = vld [vmem:[#allocation2] sm:$0xff]
    %v22 = vld [vmem:[#allocation2 + $0x8] sm:$0xff]
    %23 = vst [vmem:[#allocation5] sm:$0xff] %v21
    %24 = vst [vmem:[#allocation5 + $0x8] sm:$0xff] %v22
    // Predicated region
    $region10: #{tpu_custom_call.1} parent=1 // pred_check
      _
    $region11: #{tpu_custom_call.1} parent=1 // pred_check_branch
      %26 = sbr.rel (0) target = $region13
    $region12: #{tpu_custom_call.1} parent=1 // pred_region
      %s28 = ssub.s32 256, 256
      %29 = vsyncadd [#allocation4], %s28
      %s31 = sshll.u32 [#allocation5], 4
      %s32 = int_to_ptr.vmem [resolvable:$true] %s31
      %34 = dma.vmem_to_hbm [thread:$0]  %s32, 256, %s1, [#allocation4]
    $region13: #{tpu_custom_call.1} parent=1 // pred_fallthru
      _
    // Predicated region
    $region14: #{tpu_custom_call.1} parent=1 // pred_check
      _
    $region15: #{tpu_custom_call.1} parent=1 // pred_check_branch
      %36 = sbr.rel (0) target = $region17
    $region16: #{tpu_custom_call.1} parent=1 // pred_region
      %37 = dma.done [#allocation4], 256
    $region17: #{tpu_custom_call.1} parent=1 // pred_fallthru
      _
    %38 = vsyncpa [#allocation3], 1
    %39 = vsyncpa [#allocation4], 1

</llo_original>
